<compile_context>
chip_gen: v6e
topology: v6e:2x2x1
jax: 0.10.0
libtpu: 0.0.40
codegen_flags: <defaults>
</compile_context>

<pallas_src>
import functools

import jax
import jax.numpy as jnp
from jax.experimental import pallas as pl
from jax.experimental.pallas import tpu as pltpu

# Model hyper-parameters (small, TPU-friendly shapes).
VOCAB = 128          # vocab_size (== lane width; a padded vocab would need masking below)
EMB = 16             # embedding_dim
CTX = 4              # context_size
HIDDEN = 128         # linear1 out-features (fixed by the module)
IN_DIM = CTX * EMB   # linear1 in-features
K1 = CTX * VOCAB     # contraction size of the fused one-hot matmul
TILE_B = 128         # batch rows per grid step


def ngram_kernel(idx_ref,    # VMEM (TILE_B, CTX) int32 token ids
                 fw1_ref,    # VMEM (CTX*VOCAB, HIDDEN)  fused emb @ W1^T table (resident)
                 b1_ref,     # VMEM (1, HIDDEN) f32
                 w2_ref,     # VMEM (HIDDEN, VOCAB)      W2^T (resident)
                 b2_ref,     # VMEM (1, VOCAB) f32
                 out_ref):   # VMEM (TILE_B, VOCAB) f32 log-probs
    tile_b = out_ref.shape[0]
    cdt = fw1_ref.dtype                                   # matmul compute dtype (f32 / bf16)

    ids = idx_ref[...]                                    # (tile_b, CTX) int32
    lane = jax.lax.broadcasted_iota(jnp.int32, (tile_b, VOCAB), 1)

    # One-hot per context position, concatenated along lanes.  Each piece is a
    # full 128-lane stripe, so the concat is pure vreg placement.  An
    # out-of-range id produces an all-zero row (zero embedding contribution).
    onehot = jnp.concatenate(
        [(ids[:, c:c + 1] == lane).astype(cdt) for c in range(CTX)], axis=-1)

    # Embedding gather + flatten + linear1 as a single MXU matmul (f32 accum).
    h = jnp.dot(onehot, fw1_ref[...], preferred_element_type=jnp.float32)
    h = jnp.maximum(h + b1_ref[...], 0.0)                 # + b1, ReLU, in f32

    logits = jnp.dot(h.astype(cdt), w2_ref[...],
                     preferred_element_type=jnp.float32) + b2_ref[...]   # (tile_b, VOCAB)

    # log_softmax along dim=1, numerically stable, kept in f32.
    # NOTE: VOCAB == 128 exactly fills the lane width; if VOCAB were padded to
    # a lane multiple the padded lanes would have to be masked out of max/sum.
    m = jnp.max(logits, axis=1, keepdims=True)
    shifted = logits - m
    lse = jnp.log(jnp.sum(jnp.exp(shifted), axis=1, keepdims=True))
    out_ref[...] = (shifted - lse).astype(out_ref.dtype)


def prepare_params(emb_table, w1, b1, w2, b2, compute_dtype=jnp.float32):
    """One-time parameter prep (transposes / fusion hoisted off the call path).

    Takes PyTorch-convention parameters:
      emb_table (VOCAB, EMB), w1 (HIDDEN, IN_DIM), b1 (HIDDEN,),
      w2 (VOCAB, HIDDEN),     b2 (VOCAB,)
    and builds the fused per-context-position table
      fused_w1[c*VOCAB + v, :] = emb_table[v] @ w1.T[c*EMB:(c+1)*EMB, :]
    so that the kernel's one-hot matmul reproduces
      linear1(flatten(embedding(ids))) exactly.  Biases stay in f32.
    """
    emb_table = jnp.asarray(emb_table, jnp.float32)
    w1t = jnp.asarray(w1, jnp.float32).T                              # (IN_DIM, HIDDEN)
    fused = jnp.concatenate(
        [emb_table @ w1t[c * EMB:(c + 1) * EMB, :] for c in range(CTX)],
        axis=0)                                                       # (CTX*VOCAB, HIDDEN)
    return dict(
        fused_w1=fused.astype(compute_dtype),
        b1=jnp.asarray(b1, jnp.float32).reshape(1, HIDDEN),
        w2=jnp.asarray(w2, jnp.float32).T.astype(compute_dtype),      # (HIDDEN, VOCAB)
        b2=jnp.asarray(b2, jnp.float32).reshape(1, VOCAB),
    )


@functools.partial(jax.jit, static_argnames=("tile_b",))
def ngram_forward(params, indices, tile_b=TILE_B):
    """Batched forward: indices (B, CTX) int32 -> (B, VOCAB) f32 log-probs."""
    indices = jnp.asarray(indices, jnp.int32)
    b = indices.shape[0]
    b_pad = pl.cdiv(b, tile_b) * tile_b
    if b_pad != b:
        indices = jnp.pad(indices, ((0, b_pad - b), (0, 0)))          # pad rows use id 0

    out = pl.pallas_call(
        ngram_kernel,
        out_shape=jax.ShapeDtypeStruct((b_pad, VOCAB), jnp.float32),
        grid=(b_pad // tile_b,),
        in_specs=[
            pl.BlockSpec((tile_b, CTX), lambda i: (i, 0)),            # token ids
            pl.BlockSpec((K1, HIDDEN), lambda i: (0, 0)),             # fused emb @ W1^T
            pl.BlockSpec((1, HIDDEN), lambda i: (0, 0)),              # b1
            pl.BlockSpec((HIDDEN, VOCAB), lambda i: (0, 0)),          # W2^T
            pl.BlockSpec((1, VOCAB), lambda i: (0, 0)),               # b2
        ],
        out_specs=pl.BlockSpec((tile_b, VOCAB), lambda i: (i, 0)),
        compiler_params=pltpu.CompilerParams(
            dimension_semantics=("parallel",)),                       # 2 TCs on v7x
    )(indices, params["fused_w1"], params["b1"], params["w2"], params["b2"])
    return out[:b]


def ngram_forward_single(params, context_ids):
    """Original module semantics: (CTX,) int32 -> (1, VOCAB) log-probs."""
    return ngram_forward(params, jnp.asarray(context_ids, jnp.int32)[None, :])


def _init_params(key):
    """Deterministic parameter init mirroring the module's __init__ shapes."""
    k_emb, k_w1, k_b1, k_w2, k_b2 = jax.random.split(key, 5)
    emb_table = jax.random.normal(k_emb, (VOCAB, EMB), jnp.float32)   # Embedding ~ N(0,1)
    lim1 = 1.0 / jnp.sqrt(jnp.float32(IN_DIM))
    w1 = jax.random.uniform(k_w1, (HIDDEN, IN_DIM), jnp.float32, -lim1, lim1)
    b1 = jax.random.uniform(k_b1, (HIDDEN,), jnp.float32, -lim1, lim1)
    lim2 = 1.0 / jnp.sqrt(jnp.float32(HIDDEN))
    w2 = jax.random.uniform(k_w2, (VOCAB, HIDDEN), jnp.float32, -lim2, lim2)
    b2 = jax.random.uniform(k_b2, (VOCAB,), jnp.float32, -lim2, lim2)
    return emb_table, w1, b1, w2, b2


def _reference(emb_table, w1, b1, w2, b2, indices):
    x = emb_table[indices].reshape(indices.shape[0], -1)
    h = jnp.maximum(x @ w1.T + b1, 0.0)
    logits = h @ w2.T + b2
    return jax.nn.log_softmax(logits, axis=1)


if __name__ == "__main__":
    key = jax.random.PRNGKey(0)
    k_idx, k_params = jax.random.split(key)

    B = 200                                   # not a multiple of TILE_B: exercises padding + 2 grid steps
    indices = jax.random.randint(k_idx, (B, CTX), 0, VOCAB, dtype=jnp.int32)
    emb_table, w1, b1, w2, b2 = _init_params(k_params)
    ref = _reference(emb_table, w1, b1, w2, b2, indices)

    # f32 compute path -- tight check against the pure-JAX reference.
    params_f32 = prepare_params(emb_table, w1, b1, w2, b2, jnp.float32)
    log_probs = ngram_forward(params_f32, indices)
    jax.block_until_ready(log_probs)
    assert log_probs.shape == (B, VOCAB)
    assert jnp.allclose(log_probs, ref, atol=1e-3, rtol=1e-3), "f32 mismatch vs reference"

    # Single-context path: matches the original module's (1, VOCAB) forward.
    lp1 = ngram_forward_single(params_f32, indices[0])
    jax.block_until_ready(lp1)
    assert lp1.shape == (1, VOCAB)
    assert jnp.allclose(lp1, ref[:1], atol=1e-3, rtol=1e-3), "single-context mismatch"

    # bf16 matmul path (v6e/v7x MXU-friendly); log_softmax stays f32 in-kernel.
    params_bf16 = prepare_params(emb_table, w1, b1, w2, b2, jnp.bfloat16)
    lp_bf16 = ngram_forward(params_bf16, indices)
    jax.block_until_ready(lp_bf16)
    assert lp_bf16.shape == (B, VOCAB)
    assert jnp.allclose(lp_bf16, ref, atol=1.5e-1), "bf16 path diverged from reference"

    print("KERNEL_OK")
</pallas_src>

<mosaic_0001>
module attributes {stable_mosaic.version = 11 : i64} {
  func.func @ngram_kernel(%arg0: i32, %arg1: memref<128x4xi32, #tpu.memory_space<vmem>>, %arg2: memref<512x128xf32, #tpu.memory_space<vmem>>, %arg3: memref<1x128xf32, #tpu.memory_space<vmem>>, %arg4: memref<128x128xf32, #tpu.memory_space<vmem>>, %arg5: memref<1x128xf32, #tpu.memory_space<vmem>>, %arg6: memref<128x128xf32, #tpu.memory_space<vmem>>) attributes {dimension_semantics = [#tpu.dimension_semantics<parallel>], iteration_bounds = array<i64: 2>, scalar_prefetch = 0 : i64, scratch_operands = 0 : i64, tpu.core_type = #tpu.core_type<tc>, window_params = [{transform_indices = @transform_0, window_bounds = array<i64: 128, 4>}, {pipeline_mode = #tpu.pipeline_mode<synchronous>, transform_indices = @transform_1, window_bounds = array<i64: 512, 128>}, {pipeline_mode = #tpu.pipeline_mode<synchronous>, transform_indices = @transform_2, window_bounds = array<i64: 1, 128>}, {pipeline_mode = #tpu.pipeline_mode<synchronous>, transform_indices = @transform_3, window_bounds = array<i64: 128, 128>}, {pipeline_mode = #tpu.pipeline_mode<synchronous>, transform_indices = @transform_4, window_bounds = array<i64: 1, 128>}, {transform_indices = @transform_5, window_bounds = array<i64: 128, 128>}]} {
    %c0 = arith.constant 0 : index
    %c0_0 = arith.constant 0 : index
    %0 = vector.load %arg1[%c0, %c0_0] : memref<128x4xi32, #tpu.memory_space<vmem>>, vector<128x4xi32>
    %1 = tpu.iota {dimensions = array<i32: 1>} : vector<128x128xi32>
    %2 = vector.extract_strided_slice %0 {offsets = [0, 0], sizes = [128, 1], strides = [1, 1]} : vector<128x4xi32> to vector<128x1xi32>
    %3 = vector.broadcast %2 : vector<128x1xi32> to vector<128x128xi32>
    %4 = arith.cmpi eq, %3, %1 : vector<128x128xi32>
    %5 = arith.extui %4 : vector<128x128xi1> to vector<128x128xi32>
    %6 = arith.sitofp %5 : vector<128x128xi32> to vector<128x128xf32>
    %7 = vector.extract_strided_slice %0 {offsets = [0, 1], sizes = [128, 1], strides = [1, 1]} : vector<128x4xi32> to vector<128x1xi32>
    %8 = vector.broadcast %7 : vector<128x1xi32> to vector<128x128xi32>
    %9 = arith.cmpi eq, %8, %1 : vector<128x128xi32>
    %10 = arith.extui %9 : vector<128x128xi1> to vector<128x128xi32>
    %11 = arith.sitofp %10 : vector<128x128xi32> to vector<128x128xf32>
    %12 = vector.extract_strided_slice %0 {offsets = [0, 2], sizes = [128, 1], strides = [1, 1]} : vector<128x4xi32> to vector<128x1xi32>
    %13 = vector.broadcast %12 : vector<128x1xi32> to vector<128x128xi32>
    %14 = arith.cmpi eq, %13, %1 : vector<128x128xi32>
    %15 = arith.extui %14 : vector<128x128xi1> to vector<128x128xi32>
    %16 = arith.sitofp %15 : vector<128x128xi32> to vector<128x128xf32>
    %17 = vector.extract_strided_slice %0 {offsets = [0, 3], sizes = [128, 1], strides = [1, 1]} : vector<128x4xi32> to vector<128x1xi32>
    %18 = vector.broadcast %17 : vector<128x1xi32> to vector<128x128xi32>
    %19 = arith.cmpi eq, %18, %1 : vector<128x128xi32>
    %20 = arith.extui %19 : vector<128x128xi1> to vector<128x128xi32>
    %21 = arith.sitofp %20 : vector<128x128xi32> to vector<128x128xf32>
    %22 = tpu.concatenate %6, %11, %16, %21 in 1 : vector<128x128xf32>, vector<128x128xf32>, vector<128x128xf32>, vector<128x128xf32> -> vector<128x512xf32>
    %c0_1 = arith.constant 0 : index
    %c0_2 = arith.constant 0 : index
    %23 = vector.load %arg2[%c0_1, %c0_2] : memref<512x128xf32, #tpu.memory_space<vmem>>, vector<512x128xf32>
    %cst = arith.constant dense<0.000000e+00> : vector<128x128xf32>
    %24 = tpu.matmul %22, %23, %cst {dimension_numbers = #tpu.dot_dimension_numbers<[1], [0], [0], [1], [0, 0, 1, 1], [], []>} : vector<128x512xf32>, vector<512x128xf32>, vector<128x128xf32> -> vector<128x128xf32>
    %c0_3 = arith.constant 0 : index
    %c0_4 = arith.constant 0 : index
    %25 = vector.load %arg3[%c0_3, %c0_4] : memref<1x128xf32, #tpu.memory_space<vmem>>, vector<1x128xf32>
    %26 = vector.broadcast %25 : vector<1x128xf32> to vector<128x128xf32>
    %27 = arith.addf %24, %26 : vector<128x128xf32>
    %cst_5 = arith.constant 0.000000e+00 : f32
    %28 = vector.broadcast %cst_5 : f32 to vector<128x128xf32>
    %29 = arith.maximumf %27, %28 : vector<128x128xf32>
    %c0_6 = arith.constant 0 : index
    %c0_7 = arith.constant 0 : index
    %30 = vector.load %arg4[%c0_6, %c0_7] : memref<128x128xf32, #tpu.memory_space<vmem>>, vector<128x128xf32>
    %cst_8 = arith.constant dense<0.000000e+00> : vector<128x128xf32>
    %31 = tpu.matmul %29, %30, %cst_8 {dimension_numbers = #tpu.dot_dimension_numbers<[1], [0], [0], [1], [0, 0, 1, 1], [], []>} : vector<128x128xf32>, vector<128x128xf32>, vector<128x128xf32> -> vector<128x128xf32>
    %c0_9 = arith.constant 0 : index
    %c0_10 = arith.constant 0 : index
    %32 = vector.load %arg5[%c0_9, %c0_10] : memref<1x128xf32, #tpu.memory_space<vmem>>, vector<1x128xf32>
    %33 = vector.broadcast %32 : vector<1x128xf32> to vector<128x128xf32>
    %34 = arith.addf %31, %33 : vector<128x128xf32>
    %cst_11 = arith.constant dense<0xFF800000> : vector<128xf32>
    %35 = vector.multi_reduction <maximumf>, %34, %cst_11 [1] : vector<128x128xf32> to vector<128xf32>
    %36 = vector.shape_cast %35 : vector<128xf32> to vector<128x1xf32>
    %37 = vector.broadcast %36 : vector<128x1xf32> to vector<128x128xf32>
    %38 = arith.subf %34, %37 : vector<128x128xf32>
    %39 = math.exp %38 : vector<128x128xf32>
    %cst_12 = arith.constant dense<0.000000e+00> : vector<128xf32>
    %40 = vector.multi_reduction <add>, %39, %cst_12 [1] : vector<128x128xf32> to vector<128xf32>
    %41 = vector.shape_cast %40 : vector<128xf32> to vector<128x1xf32>
    %42 = math.log %41 : vector<128x1xf32>
    %43 = vector.broadcast %42 : vector<128x1xf32> to vector<128x128xf32>
    %44 = arith.subf %38, %43 : vector<128x128xf32>
    %c0_13 = arith.constant 0 : index
    %c0_14 = arith.constant 0 : index
    %45 = vector.load %arg6[%c0_13, %c0_14] : memref<128x128xf32, #tpu.memory_space<vmem>>, vector<128x128xf32>
    tpu.vector_store %arg6[%c0_13, %c0_14], %44 {strides = array<i32>} : memref<128x128xf32, #tpu.memory_space<vmem>>, vector<128x128xf32>,
    return
  }
  func.func @transform_0(%arg0: i32) -> (i32, i32) {
    %c0_i32 = arith.constant 0 : i32
    %c0_i32_0 = arith.constant 0 : i32
    return %arg0, %c0_i32 : i32, i32
  }
  func.func @transform_1(%arg0: i32) -> (i32, i32) {
    %c0_i32 = arith.constant 0 : i32
    %c0_i32_0 = arith.constant 0 : i32
    %c0_i32_1 = arith.constant 0 : i32
    return %c0_i32, %c0_i32_0 : i32, i32
  }
  func.func @transform_2(%arg0: i32) -> (i32, i32) {
    %c0_i32 = arith.constant 0 : i32
    %c0_i32_0 = arith.constant 0 : i32
    %c0_i32_1 = arith.constant 0 : i32
    return %c0_i32, %c0_i32_0 : i32, i32
  }
  func.func @transform_3(%arg0: i32) -> (i32, i32) {
    %c0_i32 = arith.constant 0 : i32
    %c0_i32_0 = arith.constant 0 : i32
    %c0_i32_1 = arith.constant 0 : i32
    return %c0_i32, %c0_i32_0 : i32, i32
  }
  func.func @transform_4(%arg0: i32) -> (i32, i32) {
    %c0_i32 = arith.constant 0 : i32
    %c0_i32_0 = arith.constant 0 : i32
    %c0_i32_1 = arith.constant 0 : i32
    return %c0_i32, %c0_i32_0 : i32, i32
  }
  func.func @transform_5(%arg0: i32) -> (i32, i32) {
    %c0_i32 = arith.constant 0 : i32
    %c0_i32_0 = arith.constant 0 : i32
    return %arg0, %c0_i32 : i32, i32
  }
}

</mosaic_0001>

<llo_original>
// kernel: ngram_forward.1
$region0: #{ngram_forward.1}
  #allocation0 [shape = 'u32[]', space=smem, size = 0x4, offset = 0x4, fixed_abs, tag = 'smem constant byte address 0x4 - core index']
  #allocation1 [shape = 'u32[144,128]{1,0:T(1,128)}', space=vmem, size = 0x12000, scoped, tag = 'internal scratch']
  %s0 = inlined_call_operand.vmem [shape: s32[256,4], index: 0, kind: input, shape index: {}]
  %s1 = inlined_call_operand.vmem [shape: f32[512,128], index: 1, kind: input, shape index: {}]
  %s2 = inlined_call_operand.vmem [shape: f32[1,128], index: 2, kind: input, shape index: {}]
  %s3 = inlined_call_operand.vmem [shape: f32[128,128], index: 3, kind: input, shape index: {}]
  %s4 = inlined_call_operand.vmem [shape: f32[1,128], index: 4, kind: input, shape index: {}]
  %s5 = inlined_call_operand.vmem [shape: f32[256,128], index: 5, kind: output, shape index: {}]
  %s6 = sld [smem:[#allocation0]]
  $region53: #{ngram_forward.1} parent=0
    _
  %s8 = ssub.s32 1, %s6
  %s9 = scalar_select 0, %s8, %s6
  loop: start=0, step=1, limit=4
  $region2: #{ngram_forward.1} parent=0 // loop_pre_header
    _
  $region3: #{ngram_forward.1} parent=0 // loop_header
    %s11 = sphi 0, %s15
    %p12 = scmp.ge.s32.totalorder %s11, 4
    %s21 = sphi 0, %s23
    %s24 = sphi 0, %s21
    %s25 = sphi 0, %s24
    %s41 = sphi 0, %s25
    %s45 = sphi 0, %s45
    %s47 = sphi 0, %s45
    %s48 = sphi 0, %s47
    %s62 = sphi 0, %s48
    %s66 = sphi 0, %s66
    %s68 = sphi 0, %s66
    %s69 = sphi 0, %s68
    %s83 = sphi 0, %s69
    %s87 = sphi 0, %s87
    %s89 = sphi 0, %s87
    %s90 = sphi 0, %s89
    %s104 = sphi 0, %s90
    %s108 = sphi 0, %s108
    %s110 = sphi 0, %s108
    %s111 = sphi 0, %s110
    %s125 = sphi 0, %s111
    %s131 = sphi 0, %s133
    %s134 = sphi 0, %s131
    %s135 = sphi 0, %s134
    %s151 = sphi 0, %s135
  $region4: #{ngram_forward.1} parent=0 // loop_header_branch
    %14 = sbr.rel (%p12) target = $region8
  $region5: #{ngram_forward.1} parent=0 // loop_body
    %s16 = ssub.s32 %s11, 1
    %s17 = ssub.s32 %s11, 2
    %s18 = sadd.s32 %s11, 1
    %s19 = ssub.s32 %s11, %s18
    %p20 = scmp.eq.s32.totalorder %s19, 0
    %s22 = sadd.s32 %s21, 1
    %s23 = scalar_select %p20, %s21, %s22
    %p26 = pneg %p20
    %p27 = scmp.eq.s32.totalorder %s11, 1
    %p28 = por %p26, %p27
    %p29 = scmp.ne.s32.totalorder %s21, %s24
    %p30 = scmp.eq.s32.totalorder %s11, 0
    %p31 = por %p29, %p30
    %p32 = scmp.ne.s32.totalorder %s21, %s24
    %p33 = scmp.eq.s32.totalorder %s16, 1
    %p34 = por %p32, %p33
    %p35 = scmp.ne.s32.totalorder %s24, %s25
    %p36 = scmp.eq.s32.totalorder %s16, 0
    %p37 = por %p35, %p36
    %p38 = scmp.ne.s32.totalorder %s24, %s25
    %p39 = scmp.eq.s32.totalorder %s17, 1
    %p40 = por %p38, %p39
    %p42 = scmp.ne.s32.totalorder %s25, %s41
    %p43 = scmp.eq.s32.totalorder %s17, 0
    %p44 = por %p42, %p43
    %s46 = sadd.s32 %s45, 1
    %p49 = scmp.eq.s32.totalorder %s11, 1
    %p50 = scmp.ne.s32.totalorder %s45, %s47
    %p51 = scmp.eq.s32.totalorder %s11, 0
    %p52 = por %p50, %p51
    %p53 = scmp.ne.s32.totalorder %s45, %s47
    %p54 = scmp.eq.s32.totalorder %s16, 1
    %p55 = por %p53, %p54
    %p56 = scmp.ne.s32.totalorder %s47, %s48
    %p57 = scmp.eq.s32.totalorder %s16, 0
    %p58 = por %p56, %p57
    %p59 = scmp.ne.s32.totalorder %s47, %s48
    %p60 = scmp.eq.s32.totalorder %s17, 1
    %p61 = por %p59, %p60
    %p63 = scmp.ne.s32.totalorder %s48, %s62
    %p64 = scmp.eq.s32.totalorder %s17, 0
    %p65 = por %p63, %p64
    %s67 = sadd.s32 %s66, 1
    %p70 = scmp.eq.s32.totalorder %s11, 1
    %p71 = scmp.ne.s32.totalorder %s66, %s68
    %p72 = scmp.eq.s32.totalorder %s11, 0
    %p73 = por %p71, %p72
    %p74 = scmp.ne.s32.totalorder %s66, %s68
    %p75 = scmp.eq.s32.totalorder %s16, 1
    %p76 = por %p74, %p75
    %p77 = scmp.ne.s32.totalorder %s68, %s69
    %p78 = scmp.eq.s32.totalorder %s16, 0
    %p79 = por %p77, %p78
    %p80 = scmp.ne.s32.totalorder %s68, %s69
    %p81 = scmp.eq.s32.totalorder %s17, 1
    %p82 = por %p80, %p81
    %p84 = scmp.ne.s32.totalorder %s69, %s83
    %p85 = scmp.eq.s32.totalorder %s17, 0
    %p86 = por %p84, %p85
    %s88 = sadd.s32 %s87, 1
    %p91 = scmp.eq.s32.totalorder %s11, 1
    %p92 = scmp.ne.s32.totalorder %s87, %s89
    %p93 = scmp.eq.s32.totalorder %s11, 0
    %p94 = por %p92, %p93
    %p95 = scmp.ne.s32.totalorder %s87, %s89
    %p96 = scmp.eq.s32.totalorder %s16, 1
    %p97 = por %p95, %p96
    %p98 = scmp.ne.s32.totalorder %s89, %s90
    %p99 = scmp.eq.s32.totalorder %s16, 0
    %p100 = por %p98, %p99
    %p101 = scmp.ne.s32.totalorder %s89, %s90
    %p102 = scmp.eq.s32.totalorder %s17, 1
    %p103 = por %p101, %p102
    %p105 = scmp.ne.s32.totalorder %s90, %s104
    %p106 = scmp.eq.s32.totalorder %s17, 0
    %p107 = por %p105, %p106
    %s109 = sadd.s32 %s108, 1
    %p112 = scmp.eq.s32.totalorder %s11, 1
    %p113 = scmp.ne.s32.totalorder %s108, %s110
    %p114 = scmp.eq.s32.totalorder %s11, 0
    %p115 = por %p113, %p114
    %p116 = scmp.ne.s32.totalorder %s108, %s110
    %p117 = scmp.eq.s32.totalorder %s16, 1
    %p118 = por %p116, %p117
    %p119 = scmp.ne.s32.totalorder %s110, %s111
    %p120 = scmp.eq.s32.totalorder %s16, 0
    %p121 = por %p119, %p120
    %p122 = scmp.ne.s32.totalorder %s110, %s111
    %p123 = scmp.eq.s32.totalorder %s17, 1
    %p124 = por %p122, %p123
    %p126 = scmp.ne.s32.totalorder %s111, %s125
    %p127 = scmp.eq.s32.totalorder %s17, 0
    %p128 = por %p126, %p127
    %s129 = ssub.s32 %s11, %s18
    %p130 = scmp.eq.s32.totalorder %s129, 0
    %s132 = sadd.s32 %s131, 1
    %s133 = scalar_select %p130, %s131, %s132
    %p136 = pneg %p130
    %p137 = scmp.eq.s32.totalorder %s11, 1
    %p138 = por %p136, %p137
    %p139 = scmp.ne.s32.totalorder %s131, %s134
    %p140 = scmp.eq.s32.totalorder %s11, 0
    %p141 = por %p139, %p140
    %p142 = scmp.ne.s32.totalorder %s131, %s134
    %p143 = scmp.eq.s32.totalorder %s16, 1
    %p144 = por %p142, %p143
    %p145 = scmp.ne.s32.totalorder %s134, %s135
    %p146 = scmp.eq.s32.totalorder %s16, 0
    %p147 = por %p145, %p146
    %p148 = scmp.ne.s32.totalorder %s134, %s135
    %p149 = scmp.eq.s32.totalorder %s17, 1
    %p150 = por %p148, %p149
    %p152 = scmp.ne.s32.totalorder %s135, %s151
    %p153 = scmp.eq.s32.totalorder %s17, 0
    %p154 = por %p152, %p153
    %p155 = scmp.le.s32.totalorder 1, %s11
    %p156 = scmp.lt.s32.totalorder %s11, 3
    %p157 = pnand %p155, %p156
    %p158 = pneg %p157
    // Predicated region
    $region9: #{ngram_forward.1} parent=5 // pred_check
      _
    $region10: #{ngram_forward.1} parent=5 // pred_check_branch
      %160 = sbr.rel (%p157) target = $region12
    $region11: #{ngram_forward.1} parent=5 // pred_region
      %s161 = ssub.s32 %s11, 1
      // Predicated region
      $region13: #{ngram_forward.1} parent=11 // pred_check
        %p162 = pneg %p58
      $region14: #{ngram_forward.1} parent=11 // pred_check_branch
        %164 = sbr.rel (%p162) target = $region16
      $region15: #{ngram_forward.1} parent=11 // pred_region
        _
      $region16: #{ngram_forward.1} parent=11 // pred_fallthru
        _
      // Predicated region
      $region17: #{ngram_forward.1} parent=11 // pred_check
        %p165 = pneg %p79
      $region18: #{ngram_forward.1} parent=11 // pred_check_branch
        %167 = sbr.rel (%p165) target = $region20
      $region19: #{ngram_forward.1} parent=11 // pred_region
        _
      $region20: #{ngram_forward.1} parent=11 // pred_fallthru
        _
      // Predicated region
      $region21: #{ngram_forward.1} parent=11 // pred_check
        %p168 = pneg %p100
      $region22: #{ngram_forward.1} parent=11 // pred_check_branch
        %170 = sbr.rel (%p168) target = $region24
      $region23: #{ngram_forward.1} parent=11 // pred_region
        _
      $region24: #{ngram_forward.1} parent=11 // pred_fallthru
        _
      // Predicated region
      $region25: #{ngram_forward.1} parent=11 // pred_check
        %p171 = pneg %p121
      $region26: #{ngram_forward.1} parent=11 // pred_check_branch
        %173 = sbr.rel (%p171) target = $region28
      $region27: #{ngram_forward.1} parent=11 // pred_region
        _
      $region28: #{ngram_forward.1} parent=11 // pred_fallthru
        _
    $region12: #{ngram_forward.1} parent=5 // pred_fallthru
      _
    %p174 = scmp.lt.s32.totalorder %s11, 2
    // Predicated region
    $region29: #{ngram_forward.1} parent=5 // pred_check
      %p175 = pneg %p174
    $region30: #{ngram_forward.1} parent=5 // pred_check_branch
      %177 = sbr.rel (%p175) target = $region32
    $region31: #{ngram_forward.1} parent=5 // pred_region
      // Predicated region
      $region33: #{ngram_forward.1} parent=31 // pred_check
        %p178 = pneg %p31
      $region34: #{ngram_forward.1} parent=31 // pred_check_branch
        %180 = sbr.rel (%p178) target = $region36
      $region35: #{ngram_forward.1} parent=31 // pred_region
        %s181 = smul.u32 16, %s11
        %p182 = scmp.lt.s32.totalorder %s181, 31
        %s183 = scalar_select %p182, %s181, 31
        %s184 = smul.addr %s183, 8
        %s185 = scalar_lea.vmem %s0, %s184
        %s186 = smul.u32 16, %s11
      $region36: #{ngram_forward.1} parent=31 // pred_fallthru
        _
    $region32: #{ngram_forward.1} parent=5 // pred_fallthru
      _
    %p187 = scmp.le.s32.totalorder 1, %s11
    %p188 = scmp.lt.s32.totalorder %s11, 3
    %p189 = pnand %p187, %p188
    %p190 = pneg %p189
    // Predicated region
    $region37: #{ngram_forward.1} parent=5 // pred_check
      _
    $region38: #{ngram_forward.1} parent=5 // pred_check_branch
      %192 = sbr.rel (%p189) target = $region40
    $region39: #{ngram_forward.1} parent=5 // pred_region
      %s193 = ssub.s32 %s11, 1
      %s194 = smul.u32 16, %s16
      %p195 = scmp.lt.s32.totalorder %s194, 31
      %s196 = scalar_select %p195, %s194, 31
      %s197 = smul.addr %s196, 8
      %s198 = scalar_lea.vmem %s0, %s197
      %p199 = pneg %p37
      %p200 = pneg %p34
      %p201 = pneg %p58
      %p202 = pneg %p55
      %p203 = pneg %p79
      %p204 = pneg %p76
      %p205 = pneg %p100
      %p206 = pneg %p97
      %p207 = pneg %p121
      %p208 = pneg %p118
      %p209 = pneg %p147
      %p210 = pneg %p144
      %s211 = smul.u32 16, %s16
      %p212 = scmp.lt.s32.totalorder %s211, 31
      %s213 = scalar_select %p212, %s211, 31
      %s214 = smul.addr %s213, 8
      %s215 = scalar_lea.vmem %s5, %s214
      %s216 = smul.u32 16, %s16
      %p217 = scmp.lt.s32.totalorder %s216, 31
      %s218 = scalar_select %p217, %s216, 31
      %s219 = smul.addr %s218, 8
      %s220 = scalar_lea.vmem %s0, %s219
      %s221 = smul.u32 16, %s16
      %s222 = smul.u32 16, %s16
      %p223 = scmp.lt.s32.totalorder %s222, 31
      %s224 = scalar_select %p223, %s222, 31
      %s225 = smul.addr %s224, 8
      %s226 = scalar_lea.vmem %s5, %s225
      %s227 = smul.u32 16, %s16
      %v228 = vld [vmem:[%s220] sm:$0xff]
      %v229 = vld [vmem:[%s220 + $0x8] sm:$0xff]
      %v230 = vld [vmem:[%s220 + $0x10] sm:$0xff]
      %v231 = vld [vmem:[%s220 + $0x18] sm:$0xff]
      %v232 = vld [vmem:[%s220 + $0x20] sm:$0xff]
      %v233 = vld [vmem:[%s220 + $0x28] sm:$0xff]
      %v234 = vld [vmem:[%s220 + $0x30] sm:$0xff]
      %v235 = vld [vmem:[%s220 + $0x38] sm:$0xff]
      %v236 = vld [vmem:[%s220 + $0x40] sm:$0xff]
      %v237 = vld [vmem:[%s220 + $0x48] sm:$0xff]
      %v238 = vld [vmem:[%s220 + $0x50] sm:$0xff]
      %v239 = vld [vmem:[%s220 + $0x58] sm:$0xff]
      %v240 = vld [vmem:[%s220 + $0x60] sm:$0xff]
      %v241 = vld [vmem:[%s220 + $0x68] sm:$0xff]
      %v242 = vld [vmem:[%s220 + $0x70] sm:$0xff]
      %v243 = vld [vmem:[%s220 + $0x78] sm:$0xff]
      %v244 = vlaneseq
      %v245 = vand.u32 %v244, 127
      %246 = vset.pattern.permute.xlu0 0
      %247 = vperm.xlu0 %246, %v228
      %v248 = vpop.permute.xlu0 %247
      %249 = vset.pattern.permute.xlu0 0
      %250 = vperm.xlu0 %249, %v229
      %v251 = vpop.permute.xlu0 %250
      %252 = vset.pattern.permute.xlu0 0
      %253 = vperm.xlu0 %252, %v230
      %v254 = vpop.permute.xlu0 %253
      %255 = vset.pattern.permute.xlu0 0
      %256 = vperm.xlu0 %255, %v231
      %v257 = vpop.permute.xlu0 %256
      %258 = vset.pattern.permute.xlu0 0
      %259 = vperm.xlu0 %258, %v232
      %v260 = vpop.permute.xlu0 %259
      %261 = vset.pattern.permute.xlu0 0
      %262 = vperm.xlu0 %261, %v233
      %v263 = vpop.permute.xlu0 %262
      %264 = vset.pattern.permute.xlu0 0
      %265 = vperm.xlu0 %264, %v234
      %v266 = vpop.permute.xlu0 %265
      %267 = vset.pattern.permute.xlu0 0
      %268 = vperm.xlu0 %267, %v235
      %v269 = vpop.permute.xlu0 %268
      %270 = vset.pattern.permute.xlu0 0
      %271 = vperm.xlu0 %270, %v236
      %v272 = vpop.permute.xlu0 %271
      %273 = vset.pattern.permute.xlu0 0
      %274 = vperm.xlu0 %273, %v237
      %v275 = vpop.permute.xlu0 %274
      %276 = vset.pattern.permute.xlu0 0
      %277 = vperm.xlu0 %276, %v238
      %v278 = vpop.permute.xlu0 %277
      %279 = vset.pattern.permute.xlu0 0
      %280 = vperm.xlu0 %279, %v239
      %v281 = vpop.permute.xlu0 %280
      %282 = vset.pattern.permute.xlu0 0
      %283 = vperm.xlu0 %282, %v240
      %v284 = vpop.permute.xlu0 %283
      %285 = vset.pattern.permute.xlu0 0
      %286 = vperm.xlu0 %285, %v241
      %v287 = vpop.permute.xlu0 %286
      %288 = vset.pattern.permute.xlu0 0
      %289 = vperm.xlu0 %288, %v242
      %v290 = vpop.permute.xlu0 %289
      %291 = vset.pattern.permute.xlu0 0
      %292 = vperm.xlu0 %291, %v243
      %v293 = vpop.permute.xlu0 %292
      %vm294 = vcmp.eq.s32.totalorder %v248, %v245
      %vm295 = vcmp.eq.s32.totalorder %v251, %v245
      %vm296 = vcmp.eq.s32.totalorder %v254, %v245
      %vm297 = vcmp.eq.s32.totalorder %v257, %v245
      %vm298 = vcmp.eq.s32.totalorder %v260, %v245
      %vm299 = vcmp.eq.s32.totalorder %v263, %v245
      %vm300 = vcmp.eq.s32.totalorder %v266, %v245
      %vm301 = vcmp.eq.s32.totalorder %v269, %v245
      %vm302 = vcmp.eq.s32.totalorder %v272, %v245
      %vm303 = vcmp.eq.s32.totalorder %v275, %v245
      %vm304 = vcmp.eq.s32.totalorder %v278, %v245
      %vm305 = vcmp.eq.s32.totalorder %v281, %v245
      %vm306 = vcmp.eq.s32.totalorder %v284, %v245
      %vm307 = vcmp.eq.s32.totalorder %v287, %v245
      %vm308 = vcmp.eq.s32.totalorder %v290, %v245
      %vm309 = vcmp.eq.s32.totalorder %v293, %v245
      %v310 = vsel %vm294, 1, 0
      %v311 = vsel %vm295, 1, 0
      %v312 = vsel %vm296, 1, 0
      %v313 = vsel %vm297, 1, 0
      %v314 = vsel %vm298, 1, 0
      %v315 = vsel %vm299, 1, 0
      %v316 = vsel %vm300, 1, 0
      %v317 = vsel %vm301, 1, 0
      %v318 = vsel %vm302, 1, 0
      %v319 = vsel %vm303, 1, 0
      %v320 = vsel %vm304, 1, 0
      %v321 = vsel %vm305, 1, 0
      %v322 = vsel %vm306, 1, 0
      %v323 = vsel %vm307, 1, 0
      %v324 = vsel %vm308, 1, 0
      %v325 = vsel %vm309, 1, 0
      %v326 = vcvt.s32.f32 %v310
      %v327 = vcvt.s32.f32 %v311
      %v328 = vcvt.s32.f32 %v312
      %v329 = vcvt.s32.f32 %v313
      %v330 = vcvt.s32.f32 %v314
      %v331 = vcvt.s32.f32 %v315
      %v332 = vcvt.s32.f32 %v316
      %v333 = vcvt.s32.f32 %v317
      %v334 = vcvt.s32.f32 %v318
      %v335 = vcvt.s32.f32 %v319
      %v336 = vcvt.s32.f32 %v320
      %v337 = vcvt.s32.f32 %v321
      %v338 = vcvt.s32.f32 %v322
      %v339 = vcvt.s32.f32 %v323
      %v340 = vcvt.s32.f32 %v324
      %v341 = vcvt.s32.f32 %v325
      %342 = vset.pattern.permute.xlu0 1
      %343 = vperm.xlu0 %342, %v228
      %v344 = vpop.permute.xlu0 %343
      %345 = vset.pattern.permute.xlu0 1
      %346 = vperm.xlu0 %345, %v229
      %v347 = vpop.permute.xlu0 %346
      %348 = vset.pattern.permute.xlu0 1
      %349 = vperm.xlu0 %348, %v230
      %v350 = vpop.permute.xlu0 %349
      %351 = vset.pattern.permute.xlu0 1
      %352 = vperm.xlu0 %351, %v231
      %v353 = vpop.permute.xlu0 %352
      %354 = vset.pattern.permute.xlu0 1
      %355 = vperm.xlu0 %354, %v232
      %v356 = vpop.permute.xlu0 %355
      %357 = vset.pattern.permute.xlu0 1
      %358 = vperm.xlu0 %357, %v233
      %v359 = vpop.permute.xlu0 %358
      %360 = vset.pattern.permute.xlu0 1
      %361 = vperm.xlu0 %360, %v234
      %v362 = vpop.permute.xlu0 %361
      %363 = vset.pattern.permute.xlu0 1
      %364 = vperm.xlu0 %363, %v235
      %v365 = vpop.permute.xlu0 %364
      %366 = vset.pattern.permute.xlu0 1
      %367 = vperm.xlu0 %366, %v236
      %v368 = vpop.permute.xlu0 %367
      %369 = vset.pattern.permute.xlu0 1
      %370 = vperm.xlu0 %369, %v237
      %v371 = vpop.permute.xlu0 %370
      %372 = vset.pattern.permute.xlu0 1
      %373 = vperm.xlu0 %372, %v238
      %v374 = vpop.permute.xlu0 %373
      %375 = vset.pattern.permute.xlu0 1
      %376 = vperm.xlu0 %375, %v239
      %v377 = vpop.permute.xlu0 %376
      %378 = vset.pattern.permute.xlu0 1
      %379 = vperm.xlu0 %378, %v240
      %v380 = vpop.permute.xlu0 %379
      %381 = vset.pattern.permute.xlu0 1
      %382 = vperm.xlu0 %381, %v241
      %v383 = vpop.permute.xlu0 %382
      %384 = vset.pattern.permute.xlu0 1
      %385 = vperm.xlu0 %384, %v242
      %v386 = vpop.permute.xlu0 %385
      %387 = vset.pattern.permute.xlu0 1
      %388 = vperm.xlu0 %387, %v243
      %v389 = vpop.permute.xlu0 %388
      %vm390 = vcmp.eq.s32.totalorder %v344, %v245
      %vm391 = vcmp.eq.s32.totalorder %v347, %v245
      %vm392 = vcmp.eq.s32.totalorder %v350, %v245
      %vm393 = vcmp.eq.s32.totalorder %v353, %v245
      %vm394 = vcmp.eq.s32.totalorder %v356, %v245
      %vm395 = vcmp.eq.s32.totalorder %v359, %v245
      %vm396 = vcmp.eq.s32.totalorder %v362, %v245
      %vm397 = vcmp.eq.s32.totalorder %v365, %v245
      %vm398 = vcmp.eq.s32.totalorder %v368, %v245
      %vm399 = vcmp.eq.s32.totalorder %v371, %v245
      %vm400 = vcmp.eq.s32.totalorder %v374, %v245
      %vm401 = vcmp.eq.s32.totalorder %v377, %v245
      %vm402 = vcmp.eq.s32.totalorder %v380, %v245
      %vm403 = vcmp.eq.s32.totalorder %v383, %v245
      %vm404 = vcmp.eq.s32.totalorder %v386, %v245
      %vm405 = vcmp.eq.s32.totalorder %v389, %v245
      %v406 = vsel %vm390, 1, 0
      %v407 = vsel %vm391, 1, 0
      %v408 = vsel %vm392, 1, 0
      %v409 = vsel %vm393, 1, 0
      %v410 = vsel %vm394, 1, 0
      %v411 = vsel %vm395, 1, 0
      %v412 = vsel %vm396, 1, 0
      %v413 = vsel %vm397, 1, 0
      %v414 = vsel %vm398, 1, 0
      %v415 = vsel %vm399, 1, 0
      %v416 = vsel %vm400, 1, 0
      %v417 = vsel %vm401, 1, 0
      %v418 = vsel %vm402, 1, 0
      %v419 = vsel %vm403, 1, 0
      %v420 = vsel %vm404, 1, 0
      %v421 = vsel %vm405, 1, 0
      %v422 = vcvt.s32.f32 %v406
      %v423 = vcvt.s32.f32 %v407
      %v424 = vcvt.s32.f32 %v408
      %v425 = vcvt.s32.f32 %v409
      %v426 = vcvt.s32.f32 %v410
      %v427 = vcvt.s32.f32 %v411
      %v428 = vcvt.s32.f32 %v412
      %v429 = vcvt.s32.f32 %v413
      %v430 = vcvt.s32.f32 %v414
      %v431 = vcvt.s32.f32 %v415
      %v432 = vcvt.s32.f32 %v416
      %v433 = vcvt.s32.f32 %v417
      %v434 = vcvt.s32.f32 %v418
      %v435 = vcvt.s32.f32 %v419
      %v436 = vcvt.s32.f32 %v420
      %v437 = vcvt.s32.f32 %v421
      %438 = vset.pattern.permute.xlu0 2
      %439 = vperm.xlu0 %438, %v228
      %v440 = vpop.permute.xlu0 %439
      %441 = vset.pattern.permute.xlu0 2
      %442 = vperm.xlu0 %441, %v229
      %v443 = vpop.permute.xlu0 %442
      %444 = vset.pattern.permute.xlu0 2
      %445 = vperm.xlu0 %444, %v230
      %v446 = vpop.permute.xlu0 %445
      %447 = vset.pattern.permute.xlu0 2
      %448 = vperm.xlu0 %447, %v231
      %v449 = vpop.permute.xlu0 %448
      %450 = vset.pattern.permute.xlu0 2
      %451 = vperm.xlu0 %450, %v232
      %v452 = vpop.permute.xlu0 %451
      %453 = vset.pattern.permute.xlu0 2
      %454 = vperm.xlu0 %453, %v233
      %v455 = vpop.permute.xlu0 %454
      %456 = vset.pattern.permute.xlu0 2
      %457 = vperm.xlu0 %456, %v234
      %v458 = vpop.permute.xlu0 %457
      %459 = vset.pattern.permute.xlu0 2
      %460 = vperm.xlu0 %459, %v235
      %v461 = vpop.permute.xlu0 %460
      %462 = vset.pattern.permute.xlu0 2
      %463 = vperm.xlu0 %462, %v236
      %v464 = vpop.permute.xlu0 %463
      %465 = vset.pattern.permute.xlu0 2
      %466 = vperm.xlu0 %465, %v237
      %v467 = vpop.permute.xlu0 %466
      %468 = vset.pattern.permute.xlu0 2
      %469 = vperm.xlu0 %468, %v238
      %v470 = vpop.permute.xlu0 %469
      %471 = vset.pattern.permute.xlu0 2
      %472 = vperm.xlu0 %471, %v239
      %v473 = vpop.permute.xlu0 %472
      %474 = vset.pattern.permute.xlu0 2
      %475 = vperm.xlu0 %474, %v240
      %v476 = vpop.permute.xlu0 %475
      %477 = vset.pattern.permute.xlu0 2
      %478 = vperm.xlu0 %477, %v241
      %v479 = vpop.permute.xlu0 %478
      %480 = vset.pattern.permute.xlu0 2
      %481 = vperm.xlu0 %480, %v242
      %v482 = vpop.permute.xlu0 %481
      %483 = vset.pattern.permute.xlu0 2
      %484 = vperm.xlu0 %483, %v243
      %v485 = vpop.permute.xlu0 %484
      %vm486 = vcmp.eq.s32.totalorder %v440, %v245
      %vm487 = vcmp.eq.s32.totalorder %v443, %v245
      %vm488 = vcmp.eq.s32.totalorder %v446, %v245
      %vm489 = vcmp.eq.s32.totalorder %v449, %v245
      %vm490 = vcmp.eq.s32.totalorder %v452, %v245
      %vm491 = vcmp.eq.s32.totalorder %v455, %v245
      %vm492 = vcmp.eq.s32.totalorder %v458, %v245
      %vm493 = vcmp.eq.s32.totalorder %v461, %v245
      %vm494 = vcmp.eq.s32.totalorder %v464, %v245
      %vm495 = vcmp.eq.s32.totalorder %v467, %v245
      %vm496 = vcmp.eq.s32.totalorder %v470, %v245
      %vm497 = vcmp.eq.s32.totalorder %v473, %v245
      %vm498 = vcmp.eq.s32.totalorder %v476, %v245
      %vm499 = vcmp.eq.s32.totalorder %v479, %v245
      %vm500 = vcmp.eq.s32.totalorder %v482, %v245
      %vm501 = vcmp.eq.s32.totalorder %v485, %v245
      %v502 = vsel %vm486, 1, 0
      %v503 = vsel %vm487, 1, 0
      %v504 = vsel %vm488, 1, 0
      %v505 = vsel %vm489, 1, 0
      %v506 = vsel %vm490, 1, 0
      %v507 = vsel %vm491, 1, 0
      %v508 = vsel %vm492, 1, 0
      %v509 = vsel %vm493, 1, 0
      %v510 = vsel %vm494, 1, 0
      %v511 = vsel %vm495, 1, 0
      %v512 = vsel %vm496, 1, 0
      %v513 = vsel %vm497, 1, 0
      %v514 = vsel %vm498, 1, 0
      %v515 = vsel %vm499, 1, 0
      %v516 = vsel %vm500, 1, 0
      %v517 = vsel %vm501, 1, 0
      %v518 = vcvt.s32.f32 %v502
      %v519 = vcvt.s32.f32 %v503
      %v520 = vcvt.s32.f32 %v504
      %v521 = vcvt.s32.f32 %v505
      %v522 = vcvt.s32.f32 %v506
      %v523 = vcvt.s32.f32 %v507
      %v524 = vcvt.s32.f32 %v508
      %v525 = vcvt.s32.f32 %v509
      %v526 = vcvt.s32.f32 %v510
      %v527 = vcvt.s32.f32 %v511
      %v528 = vcvt.s32.f32 %v512
      %v529 = vcvt.s32.f32 %v513
      %v530 = vcvt.s32.f32 %v514
      %v531 = vcvt.s32.f32 %v515
      %v532 = vcvt.s32.f32 %v516
      %v533 = vcvt.s32.f32 %v517
      %534 = vset.pattern.permute.xlu0 3
      %535 = vperm.xlu0 %534, %v228
      %v536 = vpop.permute.xlu0 %535
      %537 = vset.pattern.permute.xlu0 3
      %538 = vperm.xlu0 %537, %v229
      %v539 = vpop.permute.xlu0 %538
      %540 = vset.pattern.permute.xlu0 3
      %541 = vperm.xlu0 %540, %v230
      %v542 = vpop.permute.xlu0 %541
      %543 = vset.pattern.permute.xlu0 3
      %544 = vperm.xlu0 %543, %v231
      %v545 = vpop.permute.xlu0 %544
      %546 = vset.pattern.permute.xlu0 3
      %547 = vperm.xlu0 %546, %v232
      %v548 = vpop.permute.xlu0 %547
      %549 = vset.pattern.permute.xlu0 3
      %550 = vperm.xlu0 %549, %v233
      %v551 = vpop.permute.xlu0 %550
      %552 = vset.pattern.permute.xlu0 3
      %553 = vperm.xlu0 %552, %v234
      %v554 = vpop.permute.xlu0 %553
      %555 = vset.pattern.permute.xlu0 3
      %556 = vperm.xlu0 %555, %v235
      %v557 = vpop.permute.xlu0 %556
      %558 = vset.pattern.permute.xlu0 3
      %559 = vperm.xlu0 %558, %v236
      %v560 = vpop.permute.xlu0 %559
      %561 = vset.pattern.permute.xlu0 3
      %562 = vperm.xlu0 %561, %v237
      %v563 = vpop.permute.xlu0 %562
      %564 = vset.pattern.permute.xlu0 3
      %565 = vperm.xlu0 %564, %v238
      %v566 = vpop.permute.xlu0 %565
      %567 = vset.pattern.permute.xlu0 3
      %568 = vperm.xlu0 %567, %v239
      %v569 = vpop.permute.xlu0 %568
      %570 = vset.pattern.permute.xlu0 3
      %571 = vperm.xlu0 %570, %v240
      %v572 = vpop.permute.xlu0 %571
      %573 = vset.pattern.permute.xlu0 3
      %574 = vperm.xlu0 %573, %v241
      %v575 = vpop.permute.xlu0 %574
      %576 = vset.pattern.permute.xlu0 3
      %577 = vperm.xlu0 %576, %v242
      %v578 = vpop.permute.xlu0 %577
      %579 = vset.pattern.permute.xlu0 3
      %580 = vperm.xlu0 %579, %v243
      %v581 = vpop.permute.xlu0 %580
      %vm582 = vcmp.eq.s32.totalorder %v536, %v245
      %vm583 = vcmp.eq.s32.totalorder %v539, %v245
      %vm584 = vcmp.eq.s32.totalorder %v542, %v245
      %vm585 = vcmp.eq.s32.totalorder %v545, %v245
      %vm586 = vcmp.eq.s32.totalorder %v548, %v245
      %vm587 = vcmp.eq.s32.totalorder %v551, %v245
      %vm588 = vcmp.eq.s32.totalorder %v554, %v245
      %vm589 = vcmp.eq.s32.totalorder %v557, %v245
      %vm590 = vcmp.eq.s32.totalorder %v560, %v245
      %vm591 = vcmp.eq.s32.totalorder %v563, %v245
      %vm592 = vcmp.eq.s32.totalorder %v566, %v245
      %vm593 = vcmp.eq.s32.totalorder %v569, %v245
      %vm594 = vcmp.eq.s32.totalorder %v572, %v245
      %vm595 = vcmp.eq.s32.totalorder %v575, %v245
      %vm596 = vcmp.eq.s32.totalorder %v578, %v245
      %vm597 = vcmp.eq.s32.totalorder %v581, %v245
      %v598 = vsel %vm582, 1, 0
      %v599 = vsel %vm583, 1, 0
      %v600 = vsel %vm584, 1, 0
      %v601 = vsel %vm585, 1, 0
      %v602 = vsel %vm586, 1, 0
      %v603 = vsel %vm587, 1, 0
      %v604 = vsel %vm588, 1, 0
      %v605 = vsel %vm589, 1, 0
      %v606 = vsel %vm590, 1, 0
      %v607 = vsel %vm591, 1, 0
      %v608 = vsel %vm592, 1, 0
      %v609 = vsel %vm593, 1, 0
      %v610 = vsel %vm594, 1, 0
      %v611 = vsel %vm595, 1, 0
      %v612 = vsel %vm596, 1, 0
      %v613 = vsel %vm597, 1, 0
      %v614 = vcvt.s32.f32 %v598
      %v615 = vcvt.s32.f32 %v599
      %v616 = vcvt.s32.f32 %v600
      %v617 = vcvt.s32.f32 %v601
      %v618 = vcvt.s32.f32 %v602
      %v619 = vcvt.s32.f32 %v603
      %v620 = vcvt.s32.f32 %v604
      %v621 = vcvt.s32.f32 %v605
      %v622 = vcvt.s32.f32 %v606
      %v623 = vcvt.s32.f32 %v607
      %v624 = vcvt.s32.f32 %v608
      %v625 = vcvt.s32.f32 %v609
      %v626 = vcvt.s32.f32 %v610
      %v627 = vcvt.s32.f32 %v611
      %v628 = vcvt.s32.f32 %v612
      %v629 = vcvt.s32.f32 %v613
      %v630 = vld [vmem:[%s1] sm:$0xff]
      %v631 = vld [vmem:[%s1 + $0x8] sm:$0xff]
      %v632 = vld [vmem:[%s1 + $0x10] sm:$0xff]
      %v633 = vld [vmem:[%s1 + $0x18] sm:$0xff]
      %v634 = vld [vmem:[%s1 + $0x20] sm:$0xff]
      %v635 = vld [vmem:[%s1 + $0x28] sm:$0xff]
      %v636 = vld [vmem:[%s1 + $0x30] sm:$0xff]
      %v637 = vld [vmem:[%s1 + $0x38] sm:$0xff]
      %v638 = vld [vmem:[%s1 + $0x40] sm:$0xff]
      %v639 = vld [vmem:[%s1 + $0x48] sm:$0xff]
      %v640 = vld [vmem:[%s1 + $0x50] sm:$0xff]
      %v641 = vld [vmem:[%s1 + $0x58] sm:$0xff]
      %v642 = vld [vmem:[%s1 + $0x60] sm:$0xff]
      %v643 = vld [vmem:[%s1 + $0x68] sm:$0xff]
      %v644 = vld [vmem:[%s1 + $0x70] sm:$0xff]
      %v645 = vld [vmem:[%s1 + $0x78] sm:$0xff]
      %v646 = vld [vmem:[%s1 + $0x80] sm:$0xff]
      %v647 = vld [vmem:[%s1 + $0x88] sm:$0xff]
      %v648 = vld [vmem:[%s1 + $0x90] sm:$0xff]
      %v649 = vld [vmem:[%s1 + $0x98] sm:$0xff]
      %v650 = vld [vmem:[%s1 + $0xa0] sm:$0xff]
      %v651 = vld [vmem:[%s1 + $0xa8] sm:$0xff]
      %v652 = vld [vmem:[%s1 + $0xb0] sm:$0xff]
      %v653 = vld [vmem:[%s1 + $0xb8] sm:$0xff]
      %v654 = vld [vmem:[%s1 + $0xc0] sm:$0xff]
      %v655 = vld [vmem:[%s1 + $0xc8] sm:$0xff]
      %v656 = vld [vmem:[%s1 + $0xd0] sm:$0xff]
      %v657 = vld [vmem:[%s1 + $0xd8] sm:$0xff]
      %v658 = vld [vmem:[%s1 + $0xe0] sm:$0xff]
      %v659 = vld [vmem:[%s1 + $0xe8] sm:$0xff]
      %v660 = vld [vmem:[%s1 + $0xf0] sm:$0xff]
      %v661 = vld [vmem:[%s1 + $0xf8] sm:$0xff]
      %v662 = vld [vmem:[%s1 + $0x100] sm:$0xff]
      %v663 = vld [vmem:[%s1 + $0x108] sm:$0xff]
      %v664 = vld [vmem:[%s1 + $0x110] sm:$0xff]
      %v665 = vld [vmem:[%s1 + $0x118] sm:$0xff]
      %v666 = vld [vmem:[%s1 + $0x120] sm:$0xff]
      %v667 = vld [vmem:[%s1 + $0x128] sm:$0xff]
      %v668 = vld [vmem:[%s1 + $0x130] sm:$0xff]
      %v669 = vld [vmem:[%s1 + $0x138] sm:$0xff]
      %v670 = vld [vmem:[%s1 + $0x140] sm:$0xff]
      %v671 = vld [vmem:[%s1 + $0x148] sm:$0xff]
      %v672 = vld [vmem:[%s1 + $0x150] sm:$0xff]
      %v673 = vld [vmem:[%s1 + $0x158] sm:$0xff]
      %v674 = vld [vmem:[%s1 + $0x160] sm:$0xff]
      %v675 = vld [vmem:[%s1 + $0x168] sm:$0xff]
      %v676 = vld [vmem:[%s1 + $0x170] sm:$0xff]
      %v677 = vld [vmem:[%s1 + $0x178] sm:$0xff]
      %v678 = vld [vmem:[%s1 + $0x180] sm:$0xff]
      %v679 = vld [vmem:[%s1 + $0x188] sm:$0xff]
      %v680 = vld [vmem:[%s1 + $0x190] sm:$0xff]
      %v681 = vld [vmem:[%s1 + $0x198] sm:$0xff]
      %v682 = vld [vmem:[%s1 + $0x1a0] sm:$0xff]
      %v683 = vld [vmem:[%s1 + $0x1a8] sm:$0xff]
      %v684 = vld [vmem:[%s1 + $0x1b0] sm:$0xff]
      %v685 = vld [vmem:[%s1 + $0x1b8] sm:$0xff]
      %v686 = vld [vmem:[%s1 + $0x1c0] sm:$0xff]
      %v687 = vld [vmem:[%s1 + $0x1c8] sm:$0xff]
      %v688 = vld [vmem:[%s1 + $0x1d0] sm:$0xff]
      %v689 = vld [vmem:[%s1 + $0x1d8] sm:$0xff]
      %v690 = vld [vmem:[%s1 + $0x1e0] sm:$0xff]
      %v691 = vld [vmem:[%s1 + $0x1e8] sm:$0xff]
      %v692 = vld [vmem:[%s1 + $0x1f0] sm:$0xff]
      %v693 = vld [vmem:[%s1 + $0x1f8] sm:$0xff]
      %v694 = vld [vmem:[%s2] sm:$0x1]
      %v696 = vlaneseq
      %v697 = vshrl.u32 %v696, 7
      %v698 = vsub.s32 0, %v697
      %v699 = vrot.slane %v694, %v698
      %701 = vmatprep.subr.mxu0 0.0
      %702 = vmatpush1.msra.mxu0 %v645
      %703 = vmatprep.subr.mxu0 0.0
      %704 = vmatpush1.msra.mxu0 %v644
      %705 = vmatprep.subr.mxu0 0.0
      %706 = vmatpush1.msra.mxu0 %v643
      %707 = vmatprep.subr.mxu0 0.0
      %708 = vmatpush1.msra.mxu0 %v642
      %709 = vmatprep.subr.mxu0 0.0
      %710 = vmatpush1.msra.mxu0 %v641
      %711 = vmatprep.subr.mxu0 0.0
      %712 = vmatpush1.msra.mxu0 %v640
      %713 = vmatprep.subr.mxu0 0.0
      %714 = vmatpush1.msra.mxu0 %v639
      %715 = vmatprep.subr.mxu0 0.0
      %716 = vmatpush1.msra.mxu0 %v638
      %717 = vmatprep.subr.mxu0 0.0
      %718 = vmatpush1.msra.mxu0 %v637
      %719 = vmatprep.subr.mxu0 0.0
      %720 = vmatpush1.msra.mxu0 %v636
      %721 = vmatprep.subr.mxu0 0.0
      %722 = vmatpush1.msra.mxu0 %v635
      %723 = vmatprep.subr.mxu0 0.0
      %724 = vmatpush1.msra.mxu0 %v634
      %725 = vmatprep.subr.mxu0 0.0
      %726 = vmatpush1.msra.mxu0 %v633
      %727 = vmatprep.subr.mxu0 0.0
      %728 = vmatpush1.msra.mxu0 %v632
      %729 = vmatprep.subr.mxu0 0.0
      %730 = vmatpush1.msra.mxu0 %v631
      %731 = vmatprep.subr.mxu0 0.0
      %732 = vmatpush1.msra.mxu0 %v630
      %733 = vmatprep.subr.mxu0 0.0
      %734 = vmatpush2.msra.mxu0 %v661
      %735 = vmatprep.subr.mxu0 0.0
      %736 = vmatpush2.msra.mxu0 %v660
      %737 = vmatprep.subr.mxu0 0.0
      %738 = vmatpush2.msra.mxu0 %v659
      %739 = vmatprep.subr.mxu0 0.0
      %740 = vmatpush2.msra.mxu0 %v658
      %741 = vmatprep.subr.mxu0 0.0
      %742 = vmatpush2.msra.mxu0 %v657
      %743 = vmatprep.subr.mxu0 0.0
      %744 = vmatpush2.msra.mxu0 %v656
      %745 = vmatprep.subr.mxu0 0.0
      %746 = vmatpush2.msra.mxu0 %v655
      %747 = vmatprep.subr.mxu0 0.0
      %748 = vmatpush2.msra.mxu0 %v654
      %749 = vmatprep.subr.mxu0 0.0
      %750 = vmatpush2.msra.mxu0 %v653
      %751 = vmatprep.subr.mxu0 0.0
      %752 = vmatpush2.msra.mxu0 %v652
      %753 = vmatprep.subr.mxu0 0.0
      %754 = vmatpush2.msra.mxu0 %v651
      %755 = vmatprep.subr.mxu0 0.0
      %756 = vmatpush2.msra.mxu0 %v650
      %757 = vmatprep.subr.mxu0 0.0
      %758 = vmatpush2.msra.mxu0 %v649
      %759 = vmatprep.subr.mxu0 0.0
      %760 = vmatpush2.msra.mxu0 %v648
      %761 = vmatprep.subr.mxu0 0.0
      %762 = vmatpush2.msra.mxu0 %v647
      %763 = vmatprep.subr.mxu0 0.0
      %764 = vmatpush2.msra.mxu0 %v646
      %765 = vmatprep.mubr.f32.mxu0 %v422
      %766 = vmatmul.mubr.f32.gmra.mxu0 %v326
      %v767 = vpop.f32.mrf.mxu0
      %v768 = vadd.f32 %v699, %v767
      %v769 = vpop.f32.mrf.mxu0
      %770 = vmatprep.mubr.f32.mxu0 %v423
      %771 = vmatmul.mubr.f32.gmra.mxu0 %v327
      %v772 = vpop.f32.mrf.mxu0
      %v773 = vadd.f32 %v699, %v772
      %v774 = vpop.f32.mrf.mxu0
      %775 = vmatprep.mubr.f32.mxu0 %v424
      %776 = vmatmul.mubr.f32.gmra.mxu0 %v328
      %v777 = vpop.f32.mrf.mxu0
      %v778 = vadd.f32 %v699, %v777
      %v779 = vpop.f32.mrf.mxu0
      %780 = vmatprep.mubr.f32.mxu0 %v425
      %781 = vmatmul.mubr.f32.gmra.mxu0 %v329
      %v782 = vpop.f32.mrf.mxu0
      %v783 = vadd.f32 %v699, %v782
      %v784 = vpop.f32.mrf.mxu0
      %785 = vmatprep.mubr.f32.mxu0 %v426
      %786 = vmatmul.mubr.f32.gmra.mxu0 %v330
      %v787 = vpop.f32.mrf.mxu0
      %v788 = vadd.f32 %v699, %v787
      %v789 = vpop.f32.mrf.mxu0
      %790 = vmatprep.mubr.f32.mxu0 %v427
      %791 = vmatmul.mubr.f32.gmra.mxu0 %v331
      %v792 = vpop.f32.mrf.mxu0
      %v793 = vadd.f32 %v699, %v792
      %v794 = vpop.f32.mrf.mxu0
      %795 = vmatprep.mubr.f32.mxu0 %v428
      %796 = vmatmul.mubr.f32.gmra.mxu0 %v332
      %v797 = vpop.f32.mrf.mxu0
      %v798 = vadd.f32 %v699, %v797
      %v799 = vpop.f32.mrf.mxu0
      %800 = vmatprep.mubr.f32.mxu0 %v429
      %801 = vmatmul.mubr.f32.gmra.mxu0 %v333
      %v802 = vpop.f32.mrf.mxu0
      %v803 = vadd.f32 %v699, %v802
      %v804 = vpop.f32.mrf.mxu0
      %805 = vmatprep.mubr.f32.mxu0 %v430
      %806 = vmatmul.mubr.f32.gmra.mxu0 %v334
      %v807 = vpop.f32.mrf.mxu0
      %v808 = vadd.f32 %v699, %v807
      %v809 = vpop.f32.mrf.mxu0
      %810 = vmatprep.mubr.f32.mxu0 %v431
      %811 = vmatmul.mubr.f32.gmra.mxu0 %v335
      %v812 = vpop.f32.mrf.mxu0
      %v813 = vadd.f32 %v699, %v812
      %v814 = vpop.f32.mrf.mxu0
      %815 = vmatprep.mubr.f32.mxu0 %v432
      %816 = vmatmul.mubr.f32.gmra.mxu0 %v336
      %v817 = vpop.f32.mrf.mxu0
      %v818 = vadd.f32 %v699, %v817
      %v819 = vpop.f32.mrf.mxu0
      %820 = vmatprep.mubr.f32.mxu0 %v433
      %821 = vmatmul.mubr.f32.gmra.mxu0 %v337
      %v822 = vpop.f32.mrf.mxu0
      %v823 = vadd.f32 %v699, %v822
      %v824 = vpop.f32.mrf.mxu0
      %825 = vmatprep.mubr.f32.mxu0 %v434
      %826 = vmatmul.mubr.f32.gmra.mxu0 %v338
      %v827 = vpop.f32.mrf.mxu0
      %v828 = vadd.f32 %v699, %v827
      %v829 = vpop.f32.mrf.mxu0
      %830 = vmatprep.mubr.f32.mxu0 %v435
      %831 = vmatmul.mubr.f32.gmra.mxu0 %v339
      %v832 = vpop.f32.mrf.mxu0
      %v833 = vadd.f32 %v699, %v832
      %v834 = vpop.f32.mrf.mxu0
      %835 = vmatprep.mubr.f32.mxu0 %v436
      %836 = vmatmul.mubr.f32.gmra.mxu0 %v340
      %v837 = vpop.f32.mrf.mxu0
      %v838 = vadd.f32 %v699, %v837
      %v839 = vpop.f32.mrf.mxu0
      %840 = vmatprep.mubr.f32.mxu0 %v437
      %841 = vmatmul.mubr.f32.gmra.mxu0 %v341
      %v842 = vpop.f32.mrf.mxu0
      %v843 = vadd.f32 %v699, %v842
      %v844 = vpop.f32.mrf.mxu0
      %845 = vdwg.mxu0
      %846 = vmatprep.subr.mxu0 0.0
      %847 = vmatpush1.msra.mxu0 %v677
      %848 = vmatprep.subr.mxu0 0.0
      %849 = vmatpush1.msra.mxu0 %v676
      %850 = vmatprep.subr.mxu0 0.0
      %851 = vmatpush1.msra.mxu0 %v675
      %852 = vmatprep.subr.mxu0 0.0
      %853 = vmatpush1.msra.mxu0 %v674
      %854 = vmatprep.subr.mxu0 0.0
      %855 = vmatpush1.msra.mxu0 %v673
      %856 = vmatprep.subr.mxu0 0.0
      %857 = vmatpush1.msra.mxu0 %v672
      %858 = vmatprep.subr.mxu0 0.0
      %859 = vmatpush1.msra.mxu0 %v671
      %860 = vmatprep.subr.mxu0 0.0
      %861 = vmatpush1.msra.mxu0 %v670
      %862 = vmatprep.subr.mxu0 0.0
      %863 = vmatpush1.msra.mxu0 %v669
      %864 = vmatprep.subr.mxu0 0.0
      %865 = vmatpush1.msra.mxu0 %v668
      %866 = vmatprep.subr.mxu0 0.0
      %867 = vmatpush1.msra.mxu0 %v667
      %868 = vmatprep.subr.mxu0 0.0
      %869 = vmatpush1.msra.mxu0 %v666
      %870 = vmatprep.subr.mxu0 0.0
      %871 = vmatpush1.msra.mxu0 %v665
      %872 = vmatprep.subr.mxu0 0.0
      %873 = vmatpush1.msra.mxu0 %v664
      %874 = vmatprep.subr.mxu0 0.0
      %875 = vmatpush1.msra.mxu0 %v663
      %876 = vmatprep.subr.mxu0 0.0
      %877 = vmatpush1.msra.mxu0 %v662
      %878 = vmatprep.subr.mxu0 0.0
      %879 = vmatpush2.msra.mxu0 %v693
      %880 = vmatprep.subr.mxu0 0.0
      %881 = vmatpush2.msra.mxu0 %v692
      %882 = vmatprep.subr.mxu0 0.0
      %883 = vmatpush2.msra.mxu0 %v691
      %884 = vmatprep.subr.mxu0 0.0
      %885 = vmatpush2.msra.mxu0 %v690
      %886 = vmatprep.subr.mxu0 0.0
      %887 = vmatpush2.msra.mxu0 %v689
      %888 = vmatprep.subr.mxu0 0.0
      %889 = vmatpush2.msra.mxu0 %v688
      %890 = vmatprep.subr.mxu0 0.0
      %891 = vmatpush2.msra.mxu0 %v687
      %892 = vmatprep.subr.mxu0 0.0
      %893 = vmatpush2.msra.mxu0 %v686
      %894 = vmatprep.subr.mxu0 0.0
      %895 = vmatpush2.msra.mxu0 %v685
      %896 = vmatprep.subr.mxu0 0.0
      %897 = vmatpush2.msra.mxu0 %v684
      %898 = vmatprep.subr.mxu0 0.0
      %899 = vmatpush2.msra.mxu0 %v683
      %900 = vmatprep.subr.mxu0 0.0
      %901 = vmatpush2.msra.mxu0 %v682
      %902 = vmatprep.subr.mxu0 0.0
      %903 = vmatpush2.msra.mxu0 %v681
      %904 = vmatprep.subr.mxu0 0.0
      %905 = vmatpush2.msra.mxu0 %v680
      %906 = vmatprep.subr.mxu0 0.0
      %907 = vmatpush2.msra.mxu0 %v679
      %908 = vmatprep.subr.mxu0 0.0
      %909 = vmatpush2.msra.mxu0 %v678
      %910 = vmatprep.mubr.f32.mxu0 %v614
      %911 = vmatmul.mubr.f32.gmra.mxu0 %v518
      %v912 = vpop.f32.mrf.mxu0
      %v913 = vadd.f32 %v768, %v912
      %v914 = vpop.f32.mrf.mxu0
      %915 = vmatprep.mubr.f32.mxu0 %v615
      %916 = vmatmul.mubr.f32.gmra.mxu0 %v519
      %v917 = vpop.f32.mrf.mxu0
      %v918 = vadd.f32 %v773, %v917
      %v919 = vpop.f32.mrf.mxu0
      %920 = vmatprep.mubr.f32.mxu0 %v616
      %921 = vmatmul.mubr.f32.gmra.mxu0 %v520
      %v922 = vpop.f32.mrf.mxu0
      %v923 = vadd.f32 %v778, %v922
      %v924 = vpop.f32.mrf.mxu0
      %925 = vmatprep.mubr.f32.mxu0 %v617
      %926 = vmatmul.mubr.f32.gmra.mxu0 %v521
      %v927 = vpop.f32.mrf.mxu0
      %v928 = vadd.f32 %v783, %v927
      %v929 = vpop.f32.mrf.mxu0
      %930 = vmatprep.mubr.f32.mxu0 %v618
      %931 = vmatmul.mubr.f32.gmra.mxu0 %v522
      %v932 = vpop.f32.mrf.mxu0
      %v933 = vadd.f32 %v788, %v932
      %v934 = vpop.f32.mrf.mxu0
      %935 = vmatprep.mubr.f32.mxu0 %v619
      %936 = vmatmul.mubr.f32.gmra.mxu0 %v523
      %v937 = vpop.f32.mrf.mxu0
      %v938 = vadd.f32 %v793, %v937
      %v939 = vpop.f32.mrf.mxu0
      %940 = vmatprep.mubr.f32.mxu0 %v620
      %941 = vmatmul.mubr.f32.gmra.mxu0 %v524
      %v942 = vpop.f32.mrf.mxu0
      %v943 = vadd.f32 %v798, %v942
      %v944 = vpop.f32.mrf.mxu0
      %945 = vmatprep.mubr.f32.mxu0 %v621
      %946 = vmatmul.mubr.f32.gmra.mxu0 %v525
      %v947 = vpop.f32.mrf.mxu0
      %v948 = vadd.f32 %v803, %v947
      %v949 = vpop.f32.mrf.mxu0
      %950 = vmatprep.mubr.f32.mxu0 %v622
      %951 = vmatmul.mubr.f32.gmra.mxu0 %v526
      %v952 = vpop.f32.mrf.mxu0
      %v953 = vadd.f32 %v808, %v952
      %v954 = vpop.f32.mrf.mxu0
      %955 = vmatprep.mubr.f32.mxu0 %v623
      %956 = vmatmul.mubr.f32.gmra.mxu0 %v527
      %v957 = vpop.f32.mrf.mxu0
      %v958 = vadd.f32 %v813, %v957
      %v959 = vpop.f32.mrf.mxu0
      %960 = vmatprep.mubr.f32.mxu0 %v624
      %961 = vmatmul.mubr.f32.gmra.mxu0 %v528
      %v962 = vpop.f32.mrf.mxu0
      %v963 = vadd.f32 %v818, %v962
      %v964 = vpop.f32.mrf.mxu0
      %965 = vmatprep.mubr.f32.mxu0 %v625
      %966 = vmatmul.mubr.f32.gmra.mxu0 %v529
      %v967 = vpop.f32.mrf.mxu0
      %v968 = vadd.f32 %v823, %v967
      %v969 = vpop.f32.mrf.mxu0
      %970 = vmatprep.mubr.f32.mxu0 %v626
      %971 = vmatmul.mubr.f32.gmra.mxu0 %v530
      %v972 = vpop.f32.mrf.mxu0
      %v973 = vadd.f32 %v828, %v972
      %v974 = vpop.f32.mrf.mxu0
      %975 = vmatprep.mubr.f32.mxu0 %v627
      %976 = vmatmul.mubr.f32.gmra.mxu0 %v531
      %v977 = vpop.f32.mrf.mxu0
      %v978 = vadd.f32 %v833, %v977
      %v979 = vpop.f32.mrf.mxu0
      %980 = vmatprep.mubr.f32.mxu0 %v628
      %981 = vmatmul.mubr.f32.gmra.mxu0 %v532
      %v982 = vpop.f32.mrf.mxu0
      %v983 = vadd.f32 %v838, %v982
      %v984 = vpop.f32.mrf.mxu0
      %985 = vmatprep.mubr.f32.mxu0 %v629
      %986 = vmatmul.mubr.f32.gmra.mxu0 %v533
      %v987 = vpop.f32.mrf.mxu0
      %v988 = vadd.f32 %v843, %v987
      %v989 = vpop.f32.mrf.mxu0
      %990 = vdwg.mxu0
      %v991 = vmax.f32 %v913, 0.0
      %v992 = vmax.f32 %v918, 0.0
      %v993 = vmax.f32 %v923, 0.0
      %v994 = vmax.f32 %v928, 0.0
      %v995 = vmax.f32 %v933, 0.0
      %v996 = vmax.f32 %v938, 0.0
      %v997 = vmax.f32 %v943, 0.0
      %v998 = vmax.f32 %v948, 0.0
      %v999 = vmax.f32 %v953, 0.0
      %v1000 = vmax.f32 %v958, 0.0
      %v1001 = vmax.f32 %v963, 0.0
      %v1002 = vmax.f32 %v968, 0.0
      %v1003 = vmax.f32 %v973, 0.0
      %v1004 = vmax.f32 %v978, 0.0
      %v1005 = vmax.f32 %v983, 0.0
      %v1006 = vmax.f32 %v988, 0.0
      %v1007 = vld [vmem:[%s3] sm:$0xff]
      %v1008 = vld [vmem:[%s3 + $0x8] sm:$0xff]
      %v1009 = vld [vmem:[%s3 + $0x10] sm:$0xff]
      %v1010 = vld [vmem:[%s3 + $0x18] sm:$0xff]
      %v1011 = vld [vmem:[%s3 + $0x20] sm:$0xff]
      %v1012 = vld [vmem:[%s3 + $0x28] sm:$0xff]
      %v1013 = vld [vmem:[%s3 + $0x30] sm:$0xff]
      %v1014 = vld [vmem:[%s3 + $0x38] sm:$0xff]
      %v1015 = vld [vmem:[%s3 + $0x40] sm:$0xff]
      %v1016 = vld [vmem:[%s3 + $0x48] sm:$0xff]
      %v1017 = vld [vmem:[%s3 + $0x50] sm:$0xff]
      %v1018 = vld [vmem:[%s3 + $0x58] sm:$0xff]
      %v1019 = vld [vmem:[%s3 + $0x60] sm:$0xff]
      %v1020 = vld [vmem:[%s3 + $0x68] sm:$0xff]
      %v1021 = vld [vmem:[%s3 + $0x70] sm:$0xff]
      %v1022 = vld [vmem:[%s3 + $0x78] sm:$0xff]
      %v1023 = vld [vmem:[%s4] sm:$0x1]
      %v1025 = vlaneseq
      %v1026 = vshrl.u32 %v1025, 7
      %v1027 = vsub.s32 0, %v1026
      %v1028 = vrot.slane %v1023, %v1027
      %1030 = vmatprep.subr.mxu0 0.0
      %1031 = vmatpush1.msra.mxu0 %v1022
      %1032 = vmatprep.subr.mxu0 0.0
      %1033 = vmatpush1.msra.mxu0 %v1021
      %1034 = vmatprep.subr.mxu0 0.0
      %1035 = vmatpush1.msra.mxu0 %v1020
      %1036 = vmatprep.subr.mxu0 0.0
      %1037 = vmatpush1.msra.mxu0 %v1019
      %1038 = vmatprep.subr.mxu0 0.0
      %1039 = vmatpush1.msra.mxu0 %v1018
      %1040 = vmatprep.subr.mxu0 0.0
      %1041 = vmatpush1.msra.mxu0 %v1017
      %1042 = vmatprep.subr.mxu0 0.0
      %1043 = vmatpush1.msra.mxu0 %v1016
      %1044 = vmatprep.subr.mxu0 0.0
      %1045 = vmatpush1.msra.mxu0 %v1015
      %1046 = vmatprep.subr.mxu0 0.0
      %1047 = vmatpush1.msra.mxu0 %v1014
      %1048 = vmatprep.subr.mxu0 0.0
      %1049 = vmatpush1.msra.mxu0 %v1013
      %1050 = vmatprep.subr.mxu0 0.0
      %1051 = vmatpush1.msra.mxu0 %v1012
      %1052 = vmatprep.subr.mxu0 0.0
      %1053 = vmatpush1.msra.mxu0 %v1011
      %1054 = vmatprep.subr.mxu0 0.0
      %1055 = vmatpush1.msra.mxu0 %v1010
      %1056 = vmatprep.subr.mxu0 0.0
      %1057 = vmatpush1.msra.mxu0 %v1009
      %1058 = vmatprep.subr.mxu0 0.0
      %1059 = vmatpush1.msra.mxu0 %v1008
      %1060 = vmatprep.subr.mxu0 0.0
      %1061 = vmatpush1.msra.mxu0 %v1007
      %1062 = vmatprep.subr.mxu0 0.0
      %1063 = vmatpush2.msra.mxu0 0.0
      %1064 = vmatprep.subr.mxu0 0.0
      %1065 = vmatpush2.msra.mxu0 0.0
      %1066 = vmatprep.subr.mxu0 0.0
      %1067 = vmatpush2.msra.mxu0 0.0
      %1068 = vmatprep.subr.mxu0 0.0
      %1069 = vmatpush2.msra.mxu0 0.0
      %1070 = vmatprep.subr.mxu0 0.0
      %1071 = vmatpush2.msra.mxu0 0.0
      %1072 = vmatprep.subr.mxu0 0.0
      %1073 = vmatpush2.msra.mxu0 0.0
      %1074 = vmatprep.subr.mxu0 0.0
      %1075 = vmatpush2.msra.mxu0 0.0
      %1076 = vmatprep.subr.mxu0 0.0
      %1077 = vmatpush2.msra.mxu0 0.0
      %1078 = vmatprep.subr.mxu0 0.0
      %1079 = vmatpush2.msra.mxu0 0.0
      %1080 = vmatprep.subr.mxu0 0.0
      %1081 = vmatpush2.msra.mxu0 0.0
      %1082 = vmatprep.subr.mxu0 0.0
      %1083 = vmatpush2.msra.mxu0 0.0
      %1084 = vmatprep.subr.mxu0 0.0
      %1085 = vmatpush2.msra.mxu0 0.0
      %1086 = vmatprep.subr.mxu0 0.0
      %1087 = vmatpush2.msra.mxu0 0.0
      %1088 = vmatprep.subr.mxu0 0.0
      %1089 = vmatpush2.msra.mxu0 0.0
      %1090 = vmatprep.subr.mxu0 0.0
      %1091 = vmatpush2.msra.mxu0 0.0
      %1092 = vmatprep.subr.mxu0 0.0
      %1093 = vmatpush2.msra.mxu0 0.0
      %1094 = vmatprep.mubr.f32.mxu0 0.0
      %1095 = vmatmul.mubr.f32.gmra.mxu0 %v991
      %v1096 = vpop.f32.mrf.mxu0
      %v1097 = vadd.f32 %v1028, %v1096
      %v1098 = vpop.f32.mrf.mxu0
      %1099 = vmatprep.mubr.f32.mxu0 0.0
      %1100 = vmatmul.mubr.f32.gmra.mxu0 %v992
      %v1101 = vpop.f32.mrf.mxu0
      %v1102 = vadd.f32 %v1028, %v1101
      %v1103 = vpop.f32.mrf.mxu0
      %1104 = vmatprep.mubr.f32.mxu0 0.0
      %1105 = vmatmul.mubr.f32.gmra.mxu0 %v993
      %v1106 = vpop.f32.mrf.mxu0
      %v1107 = vadd.f32 %v1028, %v1106
      %v1108 = vpop.f32.mrf.mxu0
      %1109 = vmatprep.mubr.f32.mxu0 0.0
      %1110 = vmatmul.mubr.f32.gmra.mxu0 %v994
      %v1111 = vpop.f32.mrf.mxu0
      %v1112 = vadd.f32 %v1028, %v1111
      %v1113 = vpop.f32.mrf.mxu0
      %1114 = vmatprep.mubr.f32.mxu0 0.0
      %1115 = vmatmul.mubr.f32.gmra.mxu0 %v995
      %v1116 = vpop.f32.mrf.mxu0
      %v1117 = vadd.f32 %v1028, %v1116
      %v1118 = vpop.f32.mrf.mxu0
      %1119 = vmatprep.mubr.f32.mxu0 0.0
      %1120 = vmatmul.mubr.f32.gmra.mxu0 %v996
      %v1121 = vpop.f32.mrf.mxu0
      %v1122 = vadd.f32 %v1028, %v1121
      %v1123 = vpop.f32.mrf.mxu0
      %1124 = vmatprep.mubr.f32.mxu0 0.0
      %1125 = vmatmul.mubr.f32.gmra.mxu0 %v997
      %v1126 = vpop.f32.mrf.mxu0
      %v1127 = vadd.f32 %v1028, %v1126
      %v1128 = vpop.f32.mrf.mxu0
      %1129 = vmatprep.mubr.f32.mxu0 0.0
      %1130 = vmatmul.mubr.f32.gmra.mxu0 %v998
      %v1131 = vpop.f32.mrf.mxu0
      %v1132 = vadd.f32 %v1028, %v1131
      %v1133 = vpop.f32.mrf.mxu0
      %1134 = vmatprep.mubr.f32.mxu0 0.0
      %1135 = vmatmul.mubr.f32.gmra.mxu0 %v999
      %v1136 = vpop.f32.mrf.mxu0
      %v1137 = vadd.f32 %v1028, %v1136
      %v1138 = vpop.f32.mrf.mxu0
      %1139 = vmatprep.mubr.f32.mxu0 0.0
      %1140 = vmatmul.mubr.f32.gmra.mxu0 %v1000
      %v1141 = vpop.f32.mrf.mxu0
      %v1142 = vadd.f32 %v1028, %v1141
      %v1143 = vpop.f32.mrf.mxu0
      %1144 = vmatprep.mubr.f32.mxu0 0.0
      %1145 = vmatmul.mubr.f32.gmra.mxu0 %v1001
      %v1146 = vpop.f32.mrf.mxu0
      %v1147 = vadd.f32 %v1028, %v1146
      %v1148 = vpop.f32.mrf.mxu0
      %1149 = vmatprep.mubr.f32.mxu0 0.0
      %1150 = vmatmul.mubr.f32.gmra.mxu0 %v1002
      %v1151 = vpop.f32.mrf.mxu0
      %v1152 = vadd.f32 %v1028, %v1151
      %v1153 = vpop.f32.mrf.mxu0
      %1154 = vmatprep.mubr.f32.mxu0 0.0
      %1155 = vmatmul.mubr.f32.gmra.mxu0 %v1003
      %v1156 = vpop.f32.mrf.mxu0
      %v1157 = vadd.f32 %v1028, %v1156
      %v1158 = vpop.f32.mrf.mxu0
      %1159 = vmatprep.mubr.f32.mxu0 0.0
      %1160 = vmatmul.mubr.f32.gmra.mxu0 %v1004
      %v1161 = vpop.f32.mrf.mxu0
      %v1162 = vadd.f32 %v1028, %v1161
      %v1163 = vpop.f32.mrf.mxu0
      %1164 = vmatprep.mubr.f32.mxu0 0.0
      %1165 = vmatmul.mubr.f32.gmra.mxu0 %v1005
      %v1166 = vpop.f32.mrf.mxu0
      %v1167 = vadd.f32 %v1028, %v1166
      %v1168 = vpop.f32.mrf.mxu0
      %1169 = vmatprep.mubr.f32.mxu0 0.0
      %1170 = vmatmul.mubr.f32.gmra.mxu0 %v1006
      %v1171 = vpop.f32.mrf.mxu0
      %v1172 = vadd.f32 %v1028, %v1171
      %v1173 = vpop.f32.mrf.mxu0
      %1174 = vdwg.mxu0
      %1175 = vmax.xlane.f32.xlu0 %v1097
      %v1176 = vpop.xlane.xlu0 %1175
      %1177 = vmax.xlane.f32.xlu0 %v1102
      %v1178 = vpop.xlane.xlu0 %1177
      %1179 = vmax.xlane.f32.xlu0 %v1107
      %v1180 = vpop.xlane.xlu0 %1179
      %1181 = vmax.xlane.f32.xlu0 %v1112
      %v1182 = vpop.xlane.xlu0 %1181
      %1183 = vmax.xlane.f32.xlu0 %v1117
      %v1184 = vpop.xlane.xlu0 %1183
      %1185 = vmax.xlane.f32.xlu0 %v1122
      %v1186 = vpop.xlane.xlu0 %1185
      %1187 = vmax.xlane.f32.xlu0 %v1127
      %v1188 = vpop.xlane.xlu0 %1187
      %1189 = vmax.xlane.f32.xlu0 %v1132
      %v1190 = vpop.xlane.xlu0 %1189
      %1191 = vmax.xlane.f32.xlu0 %v1137
      %v1192 = vpop.xlane.xlu0 %1191
      %1193 = vmax.xlane.f32.xlu0 %v1142
      %v1194 = vpop.xlane.xlu0 %1193
      %1195 = vmax.xlane.f32.xlu0 %v1147
      %v1196 = vpop.xlane.xlu0 %1195
      %1197 = vmax.xlane.f32.xlu0 %v1152
      %v1198 = vpop.xlane.xlu0 %1197
      %1199 = vmax.xlane.f32.xlu0 %v1157
      %v1200 = vpop.xlane.xlu0 %1199
      %1201 = vmax.xlane.f32.xlu0 %v1162
      %v1202 = vpop.xlane.xlu0 %1201
      %1203 = vmax.xlane.f32.xlu0 %v1167
      %v1204 = vpop.xlane.xlu0 %1203
      %1205 = vmax.xlane.f32.xlu0 %v1172
      %v1206 = vpop.xlane.xlu0 %1205
      %v1207 = vsub.f32 %v1097, %v1176
      %v1208 = vsub.f32 %v1102, %v1178
      %v1209 = vsub.f32 %v1107, %v1180
      %v1210 = vsub.f32 %v1112, %v1182
      %v1211 = vsub.f32 %v1117, %v1184
      %v1212 = vsub.f32 %v1122, %v1186
      %v1213 = vsub.f32 %v1127, %v1188
      %v1214 = vsub.f32 %v1132, %v1190
      %v1215 = vsub.f32 %v1137, %v1192
      %v1216 = vsub.f32 %v1142, %v1194
      %v1217 = vsub.f32 %v1147, %v1196
      %v1218 = vsub.f32 %v1152, %v1198
      %v1219 = vsub.f32 %v1157, %v1200
      %v1220 = vsub.f32 %v1162, %v1202
      %v1221 = vsub.f32 %v1167, %v1204
      %v1222 = vsub.f32 %v1172, %v1206
      %v1223 = vmul.f32 %v1207, 1.442695
      %v1224 = vpow.pop %v1223
      %v1225 = vmul.f32 %v1208, 1.442695
      %v1226 = vpow.pop %v1225
      %v1227 = vmul.f32 %v1209, 1.442695
      %v1228 = vpow.pop %v1227
      %v1229 = vmul.f32 %v1210, 1.442695
      %v1230 = vpow.pop %v1229
      %v1231 = vmul.f32 %v1211, 1.442695
      %v1232 = vpow.pop %v1231
      %v1233 = vmul.f32 %v1212, 1.442695
      %v1234 = vpow.pop %v1233
      %v1235 = vmul.f32 %v1213, 1.442695
      %v1236 = vpow.pop %v1235
      %v1237 = vmul.f32 %v1214, 1.442695
      %v1238 = vpow.pop %v1237
      %v1239 = vmul.f32 %v1215, 1.442695
      %v1240 = vpow.pop %v1239
      %v1241 = vmul.f32 %v1216, 1.442695
      %v1242 = vpow.pop %v1241
      %v1243 = vmul.f32 %v1217, 1.442695
      %v1244 = vpow.pop %v1243
      %v1245 = vmul.f32 %v1218, 1.442695
      %v1246 = vpow.pop %v1245
      %v1247 = vmul.f32 %v1219, 1.442695
      %v1248 = vpow.pop %v1247
      %v1249 = vmul.f32 %v1220, 1.442695
      %v1250 = vpow.pop %v1249
      %v1251 = vmul.f32 %v1221, 1.442695
      %v1252 = vpow.pop %v1251
      %v1253 = vmul.f32 %v1222, 1.442695
      %v1254 = vpow.pop %v1253
      %1255 = vadd.xlane.f32.xlu0 %v1224
      %v1256 = vpop.xlane.xlu0 %1255
      %1257 = vadd.xlane.f32.xlu0 %v1226
      %v1258 = vpop.xlane.xlu0 %1257
      %1259 = vadd.xlane.f32.xlu0 %v1228
      %v1260 = vpop.xlane.xlu0 %1259
      %1261 = vadd.xlane.f32.xlu0 %v1230
      %v1262 = vpop.xlane.xlu0 %1261
      %1263 = vadd.xlane.f32.xlu0 %v1232
      %v1264 = vpop.xlane.xlu0 %1263
      %1265 = vadd.xlane.f32.xlu0 %v1234
      %v1266 = vpop.xlane.xlu0 %1265
      %1267 = vadd.xlane.f32.xlu0 %v1236
      %v1268 = vpop.xlane.xlu0 %1267
      %1269 = vadd.xlane.f32.xlu0 %v1238
      %v1270 = vpop.xlane.xlu0 %1269
      %1271 = vadd.xlane.f32.xlu0 %v1240
      %v1272 = vpop.xlane.xlu0 %1271
      %1273 = vadd.xlane.f32.xlu0 %v1242
      %v1274 = vpop.xlane.xlu0 %1273
      %1275 = vadd.xlane.f32.xlu0 %v1244
      %v1276 = vpop.xlane.xlu0 %1275
      %1277 = vadd.xlane.f32.xlu0 %v1246
      %v1278 = vpop.xlane.xlu0 %1277
      %1279 = vadd.xlane.f32.xlu0 %v1248
      %v1280 = vpop.xlane.xlu0 %1279
      %1281 = vadd.xlane.f32.xlu0 %v1250
      %v1282 = vpop.xlane.xlu0 %1281
      %1283 = vadd.xlane.f32.xlu0 %v1252
      %v1284 = vpop.xlane.xlu0 %1283
      %1285 = vadd.xlane.f32.xlu0 %v1254
      %v1286 = vpop.xlane.xlu0 %1285
      %v1287 = vlog2.pop %v1256
      %v1288 = vmul.f32 %v1287, 0.6931472
      %v1289 = vlog2.pop %v1258
      %v1290 = vmul.f32 %v1289, 0.6931472
      %v1291 = vlog2.pop %v1260
      %v1292 = vmul.f32 %v1291, 0.6931472
      %v1293 = vlog2.pop %v1262
      %v1294 = vmul.f32 %v1293, 0.6931472
      %v1295 = vlog2.pop %v1264
      %v1296 = vmul.f32 %v1295, 0.6931472
      %v1297 = vlog2.pop %v1266
      %v1298 = vmul.f32 %v1297, 0.6931472
      %v1299 = vlog2.pop %v1268
      %v1300 = vmul.f32 %v1299, 0.6931472
      %v1301 = vlog2.pop %v1270
      %v1302 = vmul.f32 %v1301, 0.6931472
      %v1303 = vlog2.pop %v1272
      %v1304 = vmul.f32 %v1303, 0.6931472
      %v1305 = vlog2.pop %v1274
      %v1306 = vmul.f32 %v1305, 0.6931472
      %v1307 = vlog2.pop %v1276
      %v1308 = vmul.f32 %v1307, 0.6931472
      %v1309 = vlog2.pop %v1278
      %v1310 = vmul.f32 %v1309, 0.6931472
      %v1311 = vlog2.pop %v1280
      %v1312 = vmul.f32 %v1311, 0.6931472
      %v1313 = vlog2.pop %v1282
      %v1314 = vmul.f32 %v1313, 0.6931472
      %v1315 = vlog2.pop %v1284
      %v1316 = vmul.f32 %v1315, 0.6931472
      %v1317 = vlog2.pop %v1286
      %v1318 = vmul.f32 %v1317, 0.6931472
      %v1319 = vsub.f32 %v1207, %v1288
      %v1320 = vsub.f32 %v1208, %v1290
      %v1321 = vsub.f32 %v1209, %v1292
      %v1322 = vsub.f32 %v1210, %v1294
      %v1323 = vsub.f32 %v1211, %v1296
      %v1324 = vsub.f32 %v1212, %v1298
      %v1325 = vsub.f32 %v1213, %v1300
      %v1326 = vsub.f32 %v1214, %v1302
      %v1327 = vsub.f32 %v1215, %v1304
      %v1328 = vsub.f32 %v1216, %v1306
      %v1329 = vsub.f32 %v1217, %v1308
      %v1330 = vsub.f32 %v1218, %v1310
      %v1331 = vsub.f32 %v1219, %v1312
      %v1332 = vsub.f32 %v1220, %v1314
      %v1333 = vsub.f32 %v1221, %v1316
      %v1334 = vsub.f32 %v1222, %v1318
      %1335 = vst [vmem:[%s226] sm:$0xff] %v1319
      %1336 = vst [vmem:[%s226 + $0x8] sm:$0xff] %v1320
      %1337 = vst [vmem:[%s226 + $0x10] sm:$0xff] %v1321
      %1338 = vst [vmem:[%s226 + $0x18] sm:$0xff] %v1322
      %1339 = vst [vmem:[%s226 + $0x20] sm:$0xff] %v1323
      %1340 = vst [vmem:[%s226 + $0x28] sm:$0xff] %v1324
      %1341 = vst [vmem:[%s226 + $0x30] sm:$0xff] %v1325
      %1342 = vst [vmem:[%s226 + $0x38] sm:$0xff] %v1326
      %1343 = vst [vmem:[%s226 + $0x40] sm:$0xff] %v1327
      %1344 = vst [vmem:[%s226 + $0x48] sm:$0xff] %v1328
      %1345 = vst [vmem:[%s226 + $0x50] sm:$0xff] %v1329
      %1346 = vst [vmem:[%s226 + $0x58] sm:$0xff] %v1330
      %1347 = vst [vmem:[%s226 + $0x60] sm:$0xff] %v1331
      %1348 = vst [vmem:[%s226 + $0x68] sm:$0xff] %v1332
      %1349 = vst [vmem:[%s226 + $0x70] sm:$0xff] %v1333
      %1350 = vst [vmem:[%s226 + $0x78] sm:$0xff] %v1334
      %s1351 = smul.u32 16, %s16
      %p1352 = scmp.lt.s32.totalorder %s1351, 31
      %s1353 = scalar_select %p1352, %s1351, 31
      %s1354 = smul.addr %s1353, 8
      %s1355 = scalar_lea.vmem %s5, %s1354
      // Predicated region
      $region41: #{ngram_forward.1} parent=39 // pred_check
        %p1356 = pneg %p144
      $region42: #{ngram_forward.1} parent=39 // pred_check_branch
        %1358 = sbr.rel (%p1356) target = $region44
      $region43: #{ngram_forward.1} parent=39 // pred_region
        %s1359 = smul.u32 16, %s16
      $region44: #{ngram_forward.1} parent=39 // pred_fallthru
        _
    $region40: #{ngram_forward.1} parent=5 // pred_fallthru
      _
    %p1360 = scmp.le.s32.totalorder 2, %s11
    // Predicated region
    $region45: #{ngram_forward.1} parent=5 // pred_check
      %p1361 = pneg %p1360
    $region46: #{ngram_forward.1} parent=5 // pred_check_branch
      %1363 = sbr.rel (%p1361) target = $region48
    $region47: #{ngram_forward.1} parent=5 // pred_region
      %s1364 = ssub.s32 %s11, 2
      // Predicated region
      $region49: #{ngram_forward.1} parent=47 // pred_check
        %p1365 = pneg %p150
      $region50: #{ngram_forward.1} parent=47 // pred_check_branch
        %1367 = sbr.rel (%p1365) target = $region52
      $region51: #{ngram_forward.1} parent=47 // pred_region
        %s1368 = smul.u32 16, %s17
        %p1369 = scmp.lt.s32.totalorder %s1368, 31
        %s1370 = scalar_select %p1369, %s1368, 31
        %s1371 = smul.addr %s1370, 8
        %s1372 = scalar_lea.vmem %s5, %s1371
      $region52: #{ngram_forward.1} parent=47 // pred_fallthru
        _
    $region48: #{ngram_forward.1} parent=5 // pred_fallthru
      _
  $region6: #{ngram_forward.1} parent=0 // loop_footer
    %s15 = sadd.s32 1, %s11
  $region7: #{ngram_forward.1} parent=0 // loop_footer_branch
    %10 = sbr.rel target = $region3
  $region8: #{ngram_forward.1} parent=0 // loop_exit
    _

</llo_original>
